<compile_context>
chip_gen: v7x
topology: tpu7x:2x2x1
jax: 0.10.0
libtpu: 0.0.40
codegen_flags: <defaults>
</compile_context>

<pallas_src>
import functools

import jax
import jax.numpy as jnp
from jax.experimental import pallas as pl
from jax.experimental.pallas import tpu as pltpu


def _round_up(v, m):
    return ((v + m - 1) // m) * m


# ----------------------------------------------------------------------------
# Fused Pallas kernel: the whole `depth`-layer net in one invocation.
#   refs = (a_ref, x_ref, w_0, b_0, ..., w_{d-1}, b_{d-1}, o_ref, act_a, act_b)
#   a_ref/x_ref/w_i are bf16; b_i is f32 (epilogue); output is f32.
# ----------------------------------------------------------------------------
def _fused_gcn_kernel(*refs, depth, padded_dims):
    a_ref = refs[0]
    x_ref = refs[1]
    wb_refs = refs[2:2 + 2 * depth]
    o_ref = refs[2 + 2 * depth]
    act = refs[2 + 2 * depth + 1:2 + 2 * depth + 3]   # two bf16 VMEM scratch bufs

    def mm(lhs, rhs):
        # bf16 MXU operands, f32 accumulation.
        return jnp.dot(lhs, rhs, preferred_element_type=jnp.float32)

    # Load the bf16 adjacency once; reused by every layer.
    a_mat = a_ref[...]

    for i in range(depth):
        f_in, f_out = padded_dims[i], padded_dims[i + 1]
        w_ref, b_ref = wb_refs[2 * i], wb_refs[2 * i + 1]

        # Layer 0 reads the input ref directly — no staging copy into scratch.
        cur = x_ref[...] if i == 0 else act[i % 2][:, :f_in]

        # Cheaper association: the [N, N] adjacency multiplies the narrower
        # feature dimension (moot when all padded dims are equal, but kept for
        # generality).  Intermediate is re-cast to bf16 so the second matmul
        # also runs with bf16 MXU operands.
        if f_out < f_in:
            h = mm(a_mat, mm(cur, w_ref[...]).astype(jnp.bfloat16))   # A @ (X @ W)
        else:
            h = mm(mm(a_mat, cur).astype(jnp.bfloat16), w_ref[...])   # (A @ X) @ W

        h = h + b_ref[...]                           # bias (f32 epilogue)
        if i < depth - 1:
            h = jnp.maximum(h, 0.0)                  # relu on all but last layer
            act[(i + 1) % 2][:, :f_out] = h.astype(jnp.bfloat16)
        else:
            o_ref[...] = h.astype(o_ref.dtype)


# ----------------------------------------------------------------------------
# Wrapper: pad feature dims to multiples of 128, cast MXU operands to bf16,
# one pallas_call, slice back.
# ----------------------------------------------------------------------------
def net_forward(a_hat, x, params):
    n, in_feats = x.shape
    depth = len(params)

    dims = [in_feats] + [w.shape[1] for (w, _) in params]
    pdims = [_round_up(d, 128) for d in dims]

    # Ship MXU operands already in bf16 (half the DMA bytes, no in-kernel cast).
    # Zero padding of W rows/cols + zero bias keeps padded lanes exactly zero
    # through relu, so slicing the final output is exact.
    a_bf16 = a_hat.astype(jnp.bfloat16)
    x_p = jnp.pad(x, ((0, 0), (0, pdims[0] - dims[0]))).astype(jnp.bfloat16)
    wb_inputs = []
    for i, (w, b) in enumerate(params):
        w_p = jnp.pad(w, ((0, pdims[i] - dims[i]),
                          (0, pdims[i + 1] - dims[i + 1]))).astype(jnp.bfloat16)
        b_p = jnp.pad(b.reshape(1, -1), ((0, 0), (0, pdims[i + 1] - dims[i + 1])))
        wb_inputs += [w_p, b_p]

    max_f = max(pdims)

    kernel = functools.partial(
        _fused_gcn_kernel, depth=depth, padded_dims=tuple(pdims))

    in_specs = [pl.BlockSpec(a_bf16.shape, lambda: (0, 0)),
                pl.BlockSpec(x_p.shape, lambda: (0, 0))]
    for arr in wb_inputs:
        in_specs.append(pl.BlockSpec(arr.shape, lambda: (0, 0)))

    out = pl.pallas_call(
        kernel,
        out_shape=jax.ShapeDtypeStruct((n, pdims[-1]), jnp.float32),
        in_specs=in_specs,
        out_specs=pl.BlockSpec((n, pdims[-1]), lambda: (0, 0)),
        scratch_shapes=[pltpu.VMEM((n, max_f), jnp.bfloat16),
                        pltpu.VMEM((n, max_f), jnp.bfloat16)],
    )(a_bf16, x_p, *wb_inputs)

    return out[:, :dims[-1]]


# ----------------------------------------------------------------------------
# Pure-JAX reference (same math, unfused, f32) for a correctness check.
# ----------------------------------------------------------------------------
def net_reference(a_hat, x, params):
    h = x
    depth = len(params)
    for i, (w, b) in enumerate(params):
        h = a_hat @ (h @ w) + b
        if i < depth - 1:
            h = jnp.maximum(h, 0.0)
    return h


# ----------------------------------------------------------------------------
# Glue: deterministic parameter init + normalized adjacency construction.
# ----------------------------------------------------------------------------
def init_params(key, in_features, hidden_features, out_features, depth):
    dims = [in_features] + [hidden_features] * (depth - 1) + [out_features]
    if depth == 1:
        dims = [in_features, out_features]
    params = []
    for i in range(depth):
        key, kw = jax.random.split(key)
        fan_in, fan_out = dims[i], dims[i + 1]
        limit = (6.0 / (fan_in + fan_out)) ** 0.5   # Glorot uniform, zero bias
        w = jax.random.uniform(kw, (fan_in, fan_out), jnp.float32, -limit, limit)
        b = jnp.zeros((fan_out,), jnp.float32)
        params.append((w, b))
    return params


def make_normalized_adjacency(key, n):
    logits = jax.random.uniform(key, (n, n))
    adj = (logits < 0.05).astype(jnp.float32)
    adj = jnp.maximum(adj, adj.T)                 # symmetrize
    adj = adj + jnp.eye(n, dtype=jnp.float32)     # self loops
    deg = jnp.sum(adj, axis=1)
    d_inv_sqrt = 1.0 / jnp.sqrt(jnp.maximum(deg, 1.0))
    return adj * d_inv_sqrt[:, None] * d_inv_sqrt[None, :]


if __name__ == "__main__":
    N = 128               # number of nodes
    IN_FEATS = 64
    HIDDEN = 128
    OUT_FEATS = 32
    DEPTH = 3             # in->hidden (relu), hidden->hidden (relu), hidden->out

    key = jax.random.PRNGKey(0)
    k_adj, k_x, k_p = jax.random.split(key, 3)

    a_hat = make_normalized_adjacency(k_adj, N)
    x = jax.random.normal(k_x, (N, IN_FEATS), jnp.float32)
    params = init_params(k_p, IN_FEATS, HIDDEN, OUT_FEATS, DEPTH)

    fwd = jax.jit(net_forward)
    out = fwd(a_hat, x, params)
    jax.block_until_ready(out)
    assert out.shape == (N, OUT_FEATS), out.shape

    ref = net_reference(a_hat, x, params)
    max_err = float(jnp.max(jnp.abs(out - ref)))
    # bf16 MXU operands with f32 accumulation -> ~1e-2 relative error vs f32 ref.
    assert jnp.allclose(out, ref, atol=1e-1, rtol=1e-1), max_err

    print("KERNEL_OK")
</pallas_src>

<mosaic_0001>
module attributes {stable_mosaic.version = 11 : i64} {
  func.func @_fused_gcn_kernel(%arg0: memref<128x128xbf16, #tpu.memory_space<vmem>>, %arg1: memref<128x128xbf16, #tpu.memory_space<vmem>>, %arg2: memref<128x128xbf16, #tpu.memory_space<vmem>>, %arg3: memref<1x128xf32, #tpu.memory_space<vmem>>, %arg4: memref<128x128xbf16, #tpu.memory_space<vmem>>, %arg5: memref<1x128xf32, #tpu.memory_space<vmem>>, %arg6: memref<128x128xbf16, #tpu.memory_space<vmem>>, %arg7: memref<1x128xf32, #tpu.memory_space<vmem>>, %arg8: memref<128x128xf32, #tpu.memory_space<vmem>>, %arg9: memref<128x128xbf16, #tpu.memory_space<vmem>>, %arg10: memref<128x128xbf16, #tpu.memory_space<vmem>>) attributes {dimension_semantics = [], scalar_prefetch = 0 : i64, scratch_operands = 2 : i64, tpu.core_type = #tpu.core_type<tc>} {
    %c0 = arith.constant 0 : index
    %c0_0 = arith.constant 0 : index
    %0 = vector.load %arg0[%c0, %c0_0] : memref<128x128xbf16, #tpu.memory_space<vmem>>, vector<128x128xbf16>
    %c0_1 = arith.constant 0 : index
    %c0_2 = arith.constant 0 : index
    %1 = vector.load %arg1[%c0_1, %c0_2] : memref<128x128xbf16, #tpu.memory_space<vmem>>, vector<128x128xbf16>
    %cst = arith.constant dense<0.000000e+00> : vector<128x128xf32>
    %2 = tpu.matmul %0, %1, %cst {dimension_numbers = #tpu.dot_dimension_numbers<[1], [0], [0], [1], [0, 0, 1, 1], [], []>} : vector<128x128xbf16>, vector<128x128xbf16>, vector<128x128xf32> -> vector<128x128xf32>
    %3 = arith.truncf %2 : vector<128x128xf32> to vector<128x128xbf16>
    %c0_3 = arith.constant 0 : index
    %c0_4 = arith.constant 0 : index
    %4 = vector.load %arg2[%c0_3, %c0_4] : memref<128x128xbf16, #tpu.memory_space<vmem>>, vector<128x128xbf16>
    %cst_5 = arith.constant dense<0.000000e+00> : vector<128x128xf32>
    %5 = tpu.matmul %3, %4, %cst_5 {dimension_numbers = #tpu.dot_dimension_numbers<[1], [0], [0], [1], [0, 0, 1, 1], [], []>} : vector<128x128xbf16>, vector<128x128xbf16>, vector<128x128xf32> -> vector<128x128xf32>
    %c0_6 = arith.constant 0 : index
    %c0_7 = arith.constant 0 : index
    %6 = vector.load %arg3[%c0_6, %c0_7] : memref<1x128xf32, #tpu.memory_space<vmem>>, vector<1x128xf32>
    %7 = vector.broadcast %6 : vector<1x128xf32> to vector<128x128xf32>
    %8 = arith.addf %5, %7 : vector<128x128xf32>
    %cst_8 = arith.constant 0.000000e+00 : f32
    %9 = vector.broadcast %cst_8 : f32 to vector<128x128xf32>
    %10 = arith.maximumf %8, %9 : vector<128x128xf32>
    %11 = arith.truncf %10 : vector<128x128xf32> to vector<128x128xbf16>
    %c0_9 = arith.constant 0 : index
    %c0_10 = arith.constant 0 : index
    %12 = vector.load %arg10[%c0_9, %c0_10] : memref<128x128xbf16, #tpu.memory_space<vmem>>, vector<128x128xbf16>
    tpu.vector_store %arg10[%c0_9, %c0_10], %11 {strides = array<i32>} : memref<128x128xbf16, #tpu.memory_space<vmem>>, vector<128x128xbf16>,
    %c0_11 = arith.constant 0 : index
    %c0_12 = arith.constant 0 : index
    %13 = vector.load %arg10[%c0_11, %c0_12] : memref<128x128xbf16, #tpu.memory_space<vmem>>, vector<128x128xbf16>
    %cst_13 = arith.constant dense<0.000000e+00> : vector<128x128xf32>
    %14 = tpu.matmul %0, %13, %cst_13 {dimension_numbers = #tpu.dot_dimension_numbers<[1], [0], [0], [1], [0, 0, 1, 1], [], []>} : vector<128x128xbf16>, vector<128x128xbf16>, vector<128x128xf32> -> vector<128x128xf32>
    %15 = arith.truncf %14 : vector<128x128xf32> to vector<128x128xbf16>
    %c0_14 = arith.constant 0 : index
    %c0_15 = arith.constant 0 : index
    %16 = vector.load %arg4[%c0_14, %c0_15] : memref<128x128xbf16, #tpu.memory_space<vmem>>, vector<128x128xbf16>
    %cst_16 = arith.constant dense<0.000000e+00> : vector<128x128xf32>
    %17 = tpu.matmul %15, %16, %cst_16 {dimension_numbers = #tpu.dot_dimension_numbers<[1], [0], [0], [1], [0, 0, 1, 1], [], []>} : vector<128x128xbf16>, vector<128x128xbf16>, vector<128x128xf32> -> vector<128x128xf32>
    %c0_17 = arith.constant 0 : index
    %c0_18 = arith.constant 0 : index
    %18 = vector.load %arg5[%c0_17, %c0_18] : memref<1x128xf32, #tpu.memory_space<vmem>>, vector<1x128xf32>
    %19 = vector.broadcast %18 : vector<1x128xf32> to vector<128x128xf32>
    %20 = arith.addf %17, %19 : vector<128x128xf32>
    %cst_19 = arith.constant 0.000000e+00 : f32
    %21 = vector.broadcast %cst_19 : f32 to vector<128x128xf32>
    %22 = arith.maximumf %20, %21 : vector<128x128xf32>
    %23 = arith.truncf %22 : vector<128x128xf32> to vector<128x128xbf16>
    %c0_20 = arith.constant 0 : index
    %c0_21 = arith.constant 0 : index
    %24 = vector.load %arg9[%c0_20, %c0_21] : memref<128x128xbf16, #tpu.memory_space<vmem>>, vector<128x128xbf16>
    tpu.vector_store %arg9[%c0_20, %c0_21], %23 {strides = array<i32>} : memref<128x128xbf16, #tpu.memory_space<vmem>>, vector<128x128xbf16>,
    %c0_22 = arith.constant 0 : index
    %c0_23 = arith.constant 0 : index
    %25 = vector.load %arg9[%c0_22, %c0_23] : memref<128x128xbf16, #tpu.memory_space<vmem>>, vector<128x128xbf16>
    %cst_24 = arith.constant dense<0.000000e+00> : vector<128x128xf32>
    %26 = tpu.matmul %0, %25, %cst_24 {dimension_numbers = #tpu.dot_dimension_numbers<[1], [0], [0], [1], [0, 0, 1, 1], [], []>} : vector<128x128xbf16>, vector<128x128xbf16>, vector<128x128xf32> -> vector<128x128xf32>
    %27 = arith.truncf %26 : vector<128x128xf32> to vector<128x128xbf16>
    %c0_25 = arith.constant 0 : index
    %c0_26 = arith.constant 0 : index
    %28 = vector.load %arg6[%c0_25, %c0_26] : memref<128x128xbf16, #tpu.memory_space<vmem>>, vector<128x128xbf16>
    %cst_27 = arith.constant dense<0.000000e+00> : vector<128x128xf32>
    %29 = tpu.matmul %27, %28, %cst_27 {dimension_numbers = #tpu.dot_dimension_numbers<[1], [0], [0], [1], [0, 0, 1, 1], [], []>} : vector<128x128xbf16>, vector<128x128xbf16>, vector<128x128xf32> -> vector<128x128xf32>
    %c0_28 = arith.constant 0 : index
    %c0_29 = arith.constant 0 : index
    %30 = vector.load %arg7[%c0_28, %c0_29] : memref<1x128xf32, #tpu.memory_space<vmem>>, vector<1x128xf32>
    %31 = vector.broadcast %30 : vector<1x128xf32> to vector<128x128xf32>
    %32 = arith.addf %29, %31 : vector<128x128xf32>
    %c0_30 = arith.constant 0 : index
    %c0_31 = arith.constant 0 : index
    %33 = vector.load %arg8[%c0_30, %c0_31] : memref<128x128xf32, #tpu.memory_space<vmem>>, vector<128x128xf32>
    tpu.vector_store %arg8[%c0_30, %c0_31], %32 {strides = array<i32>} : memref<128x128xf32, #tpu.memory_space<vmem>>, vector<128x128xf32>,
    return
  }
}

</mosaic_0001>

<llo_original>
// kernel: net_forward.1
$region0: #{net_forward.1}
  #allocation0 [shape = 'u32[]', space=smem, size = 0x4, offset = 0x4, fixed_abs, tag = 'smem constant byte address 0x4 - core index']
  #allocation1 [shape = 'u32[144,128]{1,0:T(1,128)}', space=vmem, size = 0x12000, scoped, tag = 'internal scratch']
  #allocation2 [shape = 'bf16[128,128]{1,0:T(16,128)(2,1)}', space=vmem, size = 0x8000, scoped, tag = 'scratch operand']
  #allocation3 [shape = 'bf16[128,128]{1,0:T(16,128)(2,1)}', space=vmem, size = 0x8000, scoped, tag = 'scratch operand']
  %s0 = inlined_call_operand.vmem [shape: bf16[128,128], index: 0, kind: input, shape index: {}]
  %s1 = inlined_call_operand.vmem [shape: bf16[128,128], index: 1, kind: input, shape index: {}]
  %s2 = inlined_call_operand.vmem [shape: bf16[128,128], index: 2, kind: input, shape index: {}]
  %s3 = inlined_call_operand.vmem [shape: f32[1,128], index: 3, kind: input, shape index: {}]
  %s4 = inlined_call_operand.vmem [shape: bf16[128,128], index: 4, kind: input, shape index: {}]
  %s5 = inlined_call_operand.vmem [shape: f32[1,128], index: 5, kind: input, shape index: {}]
  %s6 = inlined_call_operand.vmem [shape: bf16[128,128], index: 6, kind: input, shape index: {}]
  %s7 = inlined_call_operand.vmem [shape: f32[1,128], index: 7, kind: input, shape index: {}]
  %s8 = inlined_call_operand.vmem [shape: f32[128,128], index: 8, kind: output, shape index: {}]
  %s9 = sld [smem:[#allocation0]]
  $region42: #{net_forward.1} parent=0
    _
  %s11 = ssub.s32 1, %s9
  %s12 = scalar_select 0, %s11, %s9
  // Predicated region
  $region2: #{net_forward.1} parent=0 // pred_check
    _
  $region3: #{net_forward.1} parent=0 // pred_check_branch
    %14 = sbr.rel (0) target = $region5
  $region4: #{net_forward.1} parent=0 // pred_region
    _
  $region5: #{net_forward.1} parent=0 // pred_fallthru
    _
  // Predicated region
  $region6: #{net_forward.1} parent=0 // pred_check
    _
  $region7: #{net_forward.1} parent=0 // pred_check_branch
    %16 = sbr.rel (0) target = $region9
  $region8: #{net_forward.1} parent=0 // pred_region
    _
  $region9: #{net_forward.1} parent=0 // pred_fallthru
    _
  // Predicated region
  $region10: #{net_forward.1} parent=0 // pred_check
    _
  $region11: #{net_forward.1} parent=0 // pred_check_branch
    %18 = sbr.rel (0) target = $region13
  $region12: #{net_forward.1} parent=0 // pred_region
    _
  $region13: #{net_forward.1} parent=0 // pred_fallthru
    _
  // Predicated region
  $region14: #{net_forward.1} parent=0 // pred_check
    _
  $region15: #{net_forward.1} parent=0 // pred_check_branch
    %20 = sbr.rel (0) target = $region17
  $region16: #{net_forward.1} parent=0 // pred_region
    _
  $region17: #{net_forward.1} parent=0 // pred_fallthru
    _
  // Predicated region
  $region18: #{net_forward.1} parent=0 // pred_check
    _
  $region19: #{net_forward.1} parent=0 // pred_check_branch
    %22 = sbr.rel (0) target = $region21
  $region20: #{net_forward.1} parent=0 // pred_region
    _
  $region21: #{net_forward.1} parent=0 // pred_fallthru
    _
  // Predicated region
  $region22: #{net_forward.1} parent=0 // pred_check
    _
  $region23: #{net_forward.1} parent=0 // pred_check_branch
    %24 = sbr.rel (0) target = $region25
  $region24: #{net_forward.1} parent=0 // pred_region
    _
  $region25: #{net_forward.1} parent=0 // pred_fallthru
    _
  // Predicated region
  $region26: #{net_forward.1} parent=0 // pred_check
    _
  $region27: #{net_forward.1} parent=0 // pred_check_branch
    %26 = sbr.rel (0) target = $region29
  $region28: #{net_forward.1} parent=0 // pred_region
    _
  $region29: #{net_forward.1} parent=0 // pred_fallthru
    _
  // Predicated region
  $region30: #{net_forward.1} parent=0 // pred_check
    _
  $region31: #{net_forward.1} parent=0 // pred_check_branch
    %28 = sbr.rel (0) target = $region33
  $region32: #{net_forward.1} parent=0 // pred_region
    _
  $region33: #{net_forward.1} parent=0 // pred_fallthru
    _
  %v30 = vld [vmem:[%s0] sm:$0xf]
  %v31 = vld [vmem:[%s0 + $0x4] sm:$0xf]
  %v32 = vld [vmem:[%s0 + $0x8] sm:$0xf]
  %v33 = vld [vmem:[%s0 + $0xc] sm:$0xf]
  %v34 = vld [vmem:[%s0 + $0x10] sm:$0xf]
  %v35 = vld [vmem:[%s0 + $0x14] sm:$0xf]
  %v36 = vld [vmem:[%s0 + $0x18] sm:$0xf]
  %v37 = vld [vmem:[%s0 + $0x1c] sm:$0xf]
  %v38 = vld [vmem:[%s0 + $0x20] sm:$0xf]
  %v39 = vld [vmem:[%s0 + $0x24] sm:$0xf]
  %v40 = vld [vmem:[%s0 + $0x28] sm:$0xf]
  %v41 = vld [vmem:[%s0 + $0x2c] sm:$0xf]
  %v42 = vld [vmem:[%s0 + $0x30] sm:$0xf]
  %v43 = vld [vmem:[%s0 + $0x34] sm:$0xf]
  %v44 = vld [vmem:[%s0 + $0x38] sm:$0xf]
  %v45 = vld [vmem:[%s0 + $0x3c] sm:$0xf]
  %v46 = vld [vmem:[%s1] sm:$0xf]
  %v47 = vld [vmem:[%s1 + $0x4] sm:$0xf]
  %v48 = vld [vmem:[%s1 + $0x8] sm:$0xf]
  %v49 = vld [vmem:[%s1 + $0xc] sm:$0xf]
  %v50 = vld [vmem:[%s1 + $0x10] sm:$0xf]
  %v51 = vld [vmem:[%s1 + $0x14] sm:$0xf]
  %v52 = vld [vmem:[%s1 + $0x18] sm:$0xf]
  %v53 = vld [vmem:[%s1 + $0x1c] sm:$0xf]
  %v54 = vld [vmem:[%s1 + $0x20] sm:$0xf]
  %v55 = vld [vmem:[%s1 + $0x24] sm:$0xf]
  %v56 = vld [vmem:[%s1 + $0x28] sm:$0xf]
  %v57 = vld [vmem:[%s1 + $0x2c] sm:$0xf]
  %v58 = vld [vmem:[%s1 + $0x30] sm:$0xf]
  %v59 = vld [vmem:[%s1 + $0x34] sm:$0xf]
  %v60 = vld [vmem:[%s1 + $0x38] sm:$0xf]
  %v61 = vld [vmem:[%s1 + $0x3c] sm:$0xf]
  %v78 = vunpack.c.l.b16 %v30
  %v79 = vunpack.c.l.b16 %v31
  %v80 = vunpack.c.l.b16 %v32
  %v81 = vunpack.c.l.b16 %v33
  %v82 = vunpack.c.l.b16 %v34
  %v83 = vunpack.c.l.b16 %v35
  %v84 = vunpack.c.l.b16 %v36
  %v85 = vunpack.c.l.b16 %v37
  %v86 = vunpack.c.l.b16 %v38
  %v87 = vunpack.c.l.b16 %v39
  %v88 = vunpack.c.l.b16 %v40
  %v89 = vunpack.c.l.b16 %v41
  %v90 = vunpack.c.l.b16 %v42
  %v91 = vunpack.c.l.b16 %v43
  %v92 = vunpack.c.l.b16 %v44
  %v93 = vunpack.c.l.b16 %v45
  %v94 = vpack.c.b16 %v79, %v78
  %v95 = vpack.c.b16 %v81, %v80
  %v96 = vpack.c.b16 %v83, %v82
  %v97 = vpack.c.b16 %v85, %v84
  %v98 = vpack.c.b16 %v87, %v86
  %v99 = vpack.c.b16 %v89, %v88
  %v100 = vpack.c.b16 %v91, %v90
  %v101 = vpack.c.b16 %v93, %v92
  %v126 = vunpack.c.l.b16 %v46
  %v127 = vunpack.c.l.b16 %v47
  %v128 = vunpack.c.l.b16 %v48
  %v129 = vunpack.c.l.b16 %v49
  %v130 = vunpack.c.l.b16 %v50
  %v131 = vunpack.c.l.b16 %v51
  %v132 = vunpack.c.l.b16 %v52
  %v133 = vunpack.c.l.b16 %v53
  %v134 = vunpack.c.l.b16 %v54
  %v135 = vunpack.c.l.b16 %v55
  %v136 = vunpack.c.l.b16 %v56
  %v137 = vunpack.c.l.b16 %v57
  %v138 = vunpack.c.l.b16 %v58
  %v139 = vunpack.c.l.b16 %v59
  %v140 = vunpack.c.l.b16 %v60
  %v141 = vunpack.c.l.b16 %v61
  %v142 = vpack.c.b16 %v127, %v126
  %v143 = vpack.c.b16 %v129, %v128
  %v144 = vpack.c.b16 %v131, %v130
  %v145 = vpack.c.b16 %v133, %v132
  %v146 = vpack.c.b16 %v135, %v134
  %v147 = vpack.c.b16 %v137, %v136
  %v148 = vpack.c.b16 %v139, %v138
  %v149 = vpack.c.b16 %v141, %v140
  %158 = vmatprep.subr.bf16.mxu0 0
  %159 = vmatpush1.bf16.msra.mxu0 %v142
  %160 = vmatprep.subr.bf16.mxu0 0
  %161 = vmatpush1.bf16.msra.mxu0 %v143
  %162 = vmatprep.subr.bf16.mxu0 0
  %163 = vmatpush1.bf16.msra.mxu0 %v144
  %164 = vmatprep.subr.bf16.mxu0 0
  %165 = vmatpush1.bf16.msra.mxu0 %v145
  %166 = vmatprep.subr.bf16.mxu0 0
  %167 = vmatpush1.bf16.msra.mxu0 %v146
  %168 = vmatprep.subr.bf16.mxu0 0
  %169 = vmatpush1.bf16.msra.mxu0 %v147
  %170 = vmatprep.subr.bf16.mxu0 0
  %171 = vmatpush1.bf16.msra.mxu0 %v148
  %172 = vmatprep.subr.bf16.mxu0 0
  %173 = vmatpush1.bf16.msra.mxu0 %v149
  %174 = vmatprep.subr.bf16.mxu0 0
  %175 = vmatpush1.bf16.msra.mxu0 0
  %176 = vmatprep.subr.bf16.mxu0 0
  %177 = vmatpush1.bf16.msra.mxu0 0
  %178 = vmatprep.subr.bf16.mxu0 0
  %179 = vmatpush1.bf16.msra.mxu0 0
  %180 = vmatprep.subr.bf16.mxu0 0
  %181 = vmatpush1.bf16.msra.mxu0 0
  %182 = vmatprep.subr.bf16.mxu0 0
  %183 = vmatpush1.bf16.msra.mxu0 0
  %184 = vmatprep.subr.bf16.mxu0 0
  %185 = vmatpush1.bf16.msra.mxu0 0
  %186 = vmatprep.subr.bf16.mxu0 0
  %187 = vmatpush1.bf16.msra.mxu0 0
  %188 = vmatprep.subr.bf16.mxu0 0
  %189 = vmatpush1.bf16.msra.mxu0 0
  %190 = vmatprep.mubr.bf16.mxu0 0
  %191 = vmatmul.mubr.bf16.gmra.mrb[0].mxu0 %v94
  %v192 = vpop.f32.mrb[0].mxu0
  %v193 = vadd.f32 0.0, %v192
  %v194 = vpop.f32.mrb[0].mxu0
  %v195 = vpop.f32.mrb[0].mxu0
  %v196 = vadd.f32 0.0, %v195
  %v197 = vpop.f32.mrb[0].mxu0
  %198 = vmatprep.mubr.bf16.mxu0 0
  %199 = vmatmul.mubr.bf16.gmra.mrb[0].mxu0 %v95
  %v200 = vpop.f32.mrb[0].mxu0
  %v201 = vadd.f32 0.0, %v200
  %v202 = vpop.f32.mrb[0].mxu0
  %v203 = vpop.f32.mrb[0].mxu0
  %v204 = vadd.f32 0.0, %v203
  %v205 = vpop.f32.mrb[0].mxu0
  %206 = vmatprep.mubr.bf16.mxu0 0
  %207 = vmatmul.mubr.bf16.gmra.mrb[0].mxu0 %v96
  %v208 = vpop.f32.mrb[0].mxu0
  %v209 = vadd.f32 0.0, %v208
  %v210 = vpop.f32.mrb[0].mxu0
  %v211 = vpop.f32.mrb[0].mxu0
  %v212 = vadd.f32 0.0, %v211
  %v213 = vpop.f32.mrb[0].mxu0
  %214 = vmatprep.mubr.bf16.mxu0 0
  %215 = vmatmul.mubr.bf16.gmra.mrb[0].mxu0 %v97
  %v216 = vpop.f32.mrb[0].mxu0
  %v217 = vadd.f32 0.0, %v216
  %v218 = vpop.f32.mrb[0].mxu0
  %v219 = vpop.f32.mrb[0].mxu0
  %v220 = vadd.f32 0.0, %v219
  %v221 = vpop.f32.mrb[0].mxu0
  %222 = vmatprep.mubr.bf16.mxu0 0
  %223 = vmatmul.mubr.bf16.gmra.mrb[0].mxu0 %v98
  %v224 = vpop.f32.mrb[0].mxu0
  %v225 = vadd.f32 0.0, %v224
  %v226 = vpop.f32.mrb[0].mxu0
  %v227 = vpop.f32.mrb[0].mxu0
  %v228 = vadd.f32 0.0, %v227
  %v229 = vpop.f32.mrb[0].mxu0
  %230 = vmatprep.mubr.bf16.mxu0 0
  %231 = vmatmul.mubr.bf16.gmra.mrb[0].mxu0 %v99
  %v232 = vpop.f32.mrb[0].mxu0
  %v233 = vadd.f32 0.0, %v232
  %v234 = vpop.f32.mrb[0].mxu0
  %v235 = vpop.f32.mrb[0].mxu0
  %v236 = vadd.f32 0.0, %v235
  %v237 = vpop.f32.mrb[0].mxu0
  %238 = vmatprep.mubr.bf16.mxu0 0
  %239 = vmatmul.mubr.bf16.gmra.mrb[0].mxu0 %v100
  %v240 = vpop.f32.mrb[0].mxu0
  %v241 = vadd.f32 0.0, %v240
  %v242 = vpop.f32.mrb[0].mxu0
  %v243 = vpop.f32.mrb[0].mxu0
  %v244 = vadd.f32 0.0, %v243
  %v245 = vpop.f32.mrb[0].mxu0
  %246 = vmatprep.mubr.bf16.mxu0 0
  %247 = vmatmul.mubr.bf16.gmra.mrb[0].mxu0 %v101
  %v248 = vpop.f32.mrb[0].mxu0
  %v249 = vadd.f32 0.0, %v248
  %v250 = vpop.f32.mrb[0].mxu0
  %v251 = vpop.f32.mrb[0].mxu0
  %v252 = vadd.f32 0.0, %v251
  %v253 = vpop.f32.mrb[0].mxu0
  %254 = vdwg.mxu0
  %v255 = vpack.c.bf16 %v196, %v193
  %v256 = vpack.c.bf16 %v204, %v201
  %v257 = vpack.c.bf16 %v212, %v209
  %v258 = vpack.c.bf16 %v220, %v217
  %v259 = vpack.c.bf16 %v228, %v225
  %v260 = vpack.c.bf16 %v236, %v233
  %v261 = vpack.c.bf16 %v244, %v241
  %v262 = vpack.c.bf16 %v252, %v249
  %v263 = vld [vmem:[%s2] sm:$0xf]
  %v264 = vld [vmem:[%s2 + $0x4] sm:$0xf]
  %v265 = vld [vmem:[%s2 + $0x8] sm:$0xf]
  %v266 = vld [vmem:[%s2 + $0xc] sm:$0xf]
  %v267 = vld [vmem:[%s2 + $0x10] sm:$0xf]
  %v268 = vld [vmem:[%s2 + $0x14] sm:$0xf]
  %v269 = vld [vmem:[%s2 + $0x18] sm:$0xf]
  %v270 = vld [vmem:[%s2 + $0x1c] sm:$0xf]
  %v271 = vld [vmem:[%s2 + $0x20] sm:$0xf]
  %v272 = vld [vmem:[%s2 + $0x24] sm:$0xf]
  %v273 = vld [vmem:[%s2 + $0x28] sm:$0xf]
  %v274 = vld [vmem:[%s2 + $0x2c] sm:$0xf]
  %v275 = vld [vmem:[%s2 + $0x30] sm:$0xf]
  %v276 = vld [vmem:[%s2 + $0x34] sm:$0xf]
  %v277 = vld [vmem:[%s2 + $0x38] sm:$0xf]
  %v278 = vld [vmem:[%s2 + $0x3c] sm:$0xf]
  %v279 = vld [vmem:[%s3] sm:$0x1]
  %v281 = vlaneseq
  %v282 = vshrl.u32 %v281, 7
  %v283 = vsub.s32 0, %v282
  %v284 = vrot.slane %v279, %v283
  %v302 = vunpack.c.l.b16 %v263
  %v303 = vunpack.c.l.b16 %v264
  %v304 = vunpack.c.l.b16 %v265
  %v305 = vunpack.c.l.b16 %v266
  %v306 = vunpack.c.l.b16 %v267
  %v307 = vunpack.c.l.b16 %v268
  %v308 = vunpack.c.l.b16 %v269
  %v309 = vunpack.c.l.b16 %v270
  %v310 = vunpack.c.l.b16 %v271
  %v311 = vunpack.c.l.b16 %v272
  %v312 = vunpack.c.l.b16 %v273
  %v313 = vunpack.c.l.b16 %v274
  %v314 = vunpack.c.l.b16 %v275
  %v315 = vunpack.c.l.b16 %v276
  %v316 = vunpack.c.l.b16 %v277
  %v317 = vunpack.c.l.b16 %v278
  %v318 = vpack.c.b16 %v303, %v302
  %v319 = vpack.c.b16 %v305, %v304
  %v320 = vpack.c.b16 %v307, %v306
  %v321 = vpack.c.b16 %v309, %v308
  %v322 = vpack.c.b16 %v311, %v310
  %v323 = vpack.c.b16 %v313, %v312
  %v324 = vpack.c.b16 %v315, %v314
  %v325 = vpack.c.b16 %v317, %v316
  %334 = vmatprep.subr.bf16.mxu0 0
  %335 = vmatpush1.bf16.msra.mxu0 %v318
  %336 = vmatprep.subr.bf16.mxu0 0
  %337 = vmatpush1.bf16.msra.mxu0 %v319
  %338 = vmatprep.subr.bf16.mxu0 0
  %339 = vmatpush1.bf16.msra.mxu0 %v320
  %340 = vmatprep.subr.bf16.mxu0 0
  %341 = vmatpush1.bf16.msra.mxu0 %v321
  %342 = vmatprep.subr.bf16.mxu0 0
  %343 = vmatpush1.bf16.msra.mxu0 %v322
  %344 = vmatprep.subr.bf16.mxu0 0
  %345 = vmatpush1.bf16.msra.mxu0 %v323
  %346 = vmatprep.subr.bf16.mxu0 0
  %347 = vmatpush1.bf16.msra.mxu0 %v324
  %348 = vmatprep.subr.bf16.mxu0 0
  %349 = vmatpush1.bf16.msra.mxu0 %v325
  %350 = vmatprep.subr.bf16.mxu0 0
  %351 = vmatpush1.bf16.msra.mxu0 0
  %352 = vmatprep.subr.bf16.mxu0 0
  %353 = vmatpush1.bf16.msra.mxu0 0
  %354 = vmatprep.subr.bf16.mxu0 0
  %355 = vmatpush1.bf16.msra.mxu0 0
  %356 = vmatprep.subr.bf16.mxu0 0
  %357 = vmatpush1.bf16.msra.mxu0 0
  %358 = vmatprep.subr.bf16.mxu0 0
  %359 = vmatpush1.bf16.msra.mxu0 0
  %360 = vmatprep.subr.bf16.mxu0 0
  %361 = vmatpush1.bf16.msra.mxu0 0
  %362 = vmatprep.subr.bf16.mxu0 0
  %363 = vmatpush1.bf16.msra.mxu0 0
  %364 = vmatprep.subr.bf16.mxu0 0
  %365 = vmatpush1.bf16.msra.mxu0 0
  %366 = vmatprep.mubr.bf16.mxu0 0
  %367 = vmatmul.mubr.bf16.gmra.mrb[0].mxu0 %v255
  %v368 = vpop.f32.mrb[0].mxu0
  %v369 = vadd.f32 %v284, %v368
  %v370 = vpop.f32.mrb[0].mxu0
  %v371 = vpop.f32.mrb[0].mxu0
  %v372 = vadd.f32 %v284, %v371
  %v373 = vpop.f32.mrb[0].mxu0
  %374 = vmatprep.mubr.bf16.mxu0 0
  %375 = vmatmul.mubr.bf16.gmra.mrb[0].mxu0 %v256
  %v376 = vpop.f32.mrb[0].mxu0
  %v377 = vadd.f32 %v284, %v376
  %v378 = vpop.f32.mrb[0].mxu0
  %v379 = vpop.f32.mrb[0].mxu0
  %v380 = vadd.f32 %v284, %v379
  %v381 = vpop.f32.mrb[0].mxu0
  %382 = vmatprep.mubr.bf16.mxu0 0
  %383 = vmatmul.mubr.bf16.gmra.mrb[0].mxu0 %v257
  %v384 = vpop.f32.mrb[0].mxu0
  %v385 = vadd.f32 %v284, %v384
  %v386 = vpop.f32.mrb[0].mxu0
  %v387 = vpop.f32.mrb[0].mxu0
  %v388 = vadd.f32 %v284, %v387
  %v389 = vpop.f32.mrb[0].mxu0
  %390 = vmatprep.mubr.bf16.mxu0 0
  %391 = vmatmul.mubr.bf16.gmra.mrb[0].mxu0 %v258
  %v392 = vpop.f32.mrb[0].mxu0
  %v393 = vadd.f32 %v284, %v392
  %v394 = vpop.f32.mrb[0].mxu0
  %v395 = vpop.f32.mrb[0].mxu0
  %v396 = vadd.f32 %v284, %v395
  %v397 = vpop.f32.mrb[0].mxu0
  %398 = vmatprep.mubr.bf16.mxu0 0
  %399 = vmatmul.mubr.bf16.gmra.mrb[0].mxu0 %v259
  %v400 = vpop.f32.mrb[0].mxu0
  %v401 = vadd.f32 %v284, %v400
  %v402 = vpop.f32.mrb[0].mxu0
  %v403 = vpop.f32.mrb[0].mxu0
  %v404 = vadd.f32 %v284, %v403
  %v405 = vpop.f32.mrb[0].mxu0
  %406 = vmatprep.mubr.bf16.mxu0 0
  %407 = vmatmul.mubr.bf16.gmra.mrb[0].mxu0 %v260
  %v408 = vpop.f32.mrb[0].mxu0
  %v409 = vadd.f32 %v284, %v408
  %v410 = vpop.f32.mrb[0].mxu0
  %v411 = vpop.f32.mrb[0].mxu0
  %v412 = vadd.f32 %v284, %v411
  %v413 = vpop.f32.mrb[0].mxu0
  %414 = vmatprep.mubr.bf16.mxu0 0
  %415 = vmatmul.mubr.bf16.gmra.mrb[0].mxu0 %v261
  %v416 = vpop.f32.mrb[0].mxu0
  %v417 = vadd.f32 %v284, %v416
  %v418 = vpop.f32.mrb[0].mxu0
  %v419 = vpop.f32.mrb[0].mxu0
  %v420 = vadd.f32 %v284, %v419
  %v421 = vpop.f32.mrb[0].mxu0
  %422 = vmatprep.mubr.bf16.mxu0 0
  %423 = vmatmul.mubr.bf16.gmra.mrb[0].mxu0 %v262
  %v424 = vpop.f32.mrb[0].mxu0
  %v425 = vadd.f32 %v284, %v424
  %v426 = vpop.f32.mrb[0].mxu0
  %v427 = vpop.f32.mrb[0].mxu0
  %v428 = vadd.f32 %v284, %v427
  %v429 = vpop.f32.mrb[0].mxu0
  %430 = vdwg.mxu0
  %v431 = vmax.f32 %v369, 0.0
  %v432 = vmax.f32 %v372, 0.0
  %v433 = vmax.f32 %v377, 0.0
  %v434 = vmax.f32 %v380, 0.0
  %v435 = vmax.f32 %v385, 0.0
  %v436 = vmax.f32 %v388, 0.0
  %v437 = vmax.f32 %v393, 0.0
  %v438 = vmax.f32 %v396, 0.0
  %v439 = vmax.f32 %v401, 0.0
  %v440 = vmax.f32 %v404, 0.0
  %v441 = vmax.f32 %v409, 0.0
  %v442 = vmax.f32 %v412, 0.0
  %v443 = vmax.f32 %v417, 0.0
  %v444 = vmax.f32 %v420, 0.0
  %v445 = vmax.f32 %v425, 0.0
  %v446 = vmax.f32 %v428, 0.0
  %v447 = vpack.c.bf16 %v432, %v431
  %v448 = vpack.c.bf16 %v434, %v433
  %v449 = vpack.c.bf16 %v436, %v435
  %v450 = vpack.c.bf16 %v438, %v437
  %v451 = vpack.c.bf16 %v440, %v439
  %v452 = vpack.c.bf16 %v442, %v441
  %v453 = vpack.c.bf16 %v444, %v443
  %v454 = vpack.c.bf16 %v446, %v445
  %455 = vst [vmem:[#allocation3] sm:$0xff] %v447
  %456 = vst [vmem:[#allocation3 + $0x8] sm:$0xff] %v448
  %457 = vst [vmem:[#allocation3 + $0x10] sm:$0xff] %v449
  %458 = vst [vmem:[#allocation3 + $0x18] sm:$0xff] %v450
  %459 = vst [vmem:[#allocation3 + $0x20] sm:$0xff] %v451
  %460 = vst [vmem:[#allocation3 + $0x28] sm:$0xff] %v452
  %461 = vst [vmem:[#allocation3 + $0x30] sm:$0xff] %v453
  %462 = vst [vmem:[#allocation3 + $0x38] sm:$0xff] %v454
  %v463 = vld [vmem:[#allocation3] sm:$0xff]
  %v464 = vld [vmem:[#allocation3 + $0x8] sm:$0xff]
  %v465 = vld [vmem:[#allocation3 + $0x10] sm:$0xff]
  %v466 = vld [vmem:[#allocation3 + $0x18] sm:$0xff]
  %v467 = vld [vmem:[#allocation3 + $0x20] sm:$0xff]
  %v468 = vld [vmem:[#allocation3 + $0x28] sm:$0xff]
  %v469 = vld [vmem:[#allocation3 + $0x30] sm:$0xff]
  %v470 = vld [vmem:[#allocation3 + $0x38] sm:$0xff]
  %471 = vmatprep.subr.bf16.mxu0 0
  %472 = vmatpush1.bf16.msra.mxu0 %v463
  %473 = vmatprep.subr.bf16.mxu0 0
  %474 = vmatpush1.bf16.msra.mxu0 %v464
  %475 = vmatprep.subr.bf16.mxu0 0
  %476 = vmatpush1.bf16.msra.mxu0 %v465
  %477 = vmatprep.subr.bf16.mxu0 0
  %478 = vmatpush1.bf16.msra.mxu0 %v466
  %479 = vmatprep.subr.bf16.mxu0 0
  %480 = vmatpush1.bf16.msra.mxu0 %v467
  %481 = vmatprep.subr.bf16.mxu0 0
  %482 = vmatpush1.bf16.msra.mxu0 %v468
  %483 = vmatprep.subr.bf16.mxu0 0
  %484 = vmatpush1.bf16.msra.mxu0 %v469
  %485 = vmatprep.subr.bf16.mxu0 0
  %486 = vmatpush1.bf16.msra.mxu0 %v470
  %487 = vmatprep.subr.bf16.mxu0 0
  %488 = vmatpush1.bf16.msra.mxu0 0
  %489 = vmatprep.subr.bf16.mxu0 0
  %490 = vmatpush1.bf16.msra.mxu0 0
  %491 = vmatprep.subr.bf16.mxu0 0
  %492 = vmatpush1.bf16.msra.mxu0 0
  %493 = vmatprep.subr.bf16.mxu0 0
  %494 = vmatpush1.bf16.msra.mxu0 0
  %495 = vmatprep.subr.bf16.mxu0 0
  %496 = vmatpush1.bf16.msra.mxu0 0
  %497 = vmatprep.subr.bf16.mxu0 0
  %498 = vmatpush1.bf16.msra.mxu0 0
  %499 = vmatprep.subr.bf16.mxu0 0
  %500 = vmatpush1.bf16.msra.mxu0 0
  %501 = vmatprep.subr.bf16.mxu0 0
  %502 = vmatpush1.bf16.msra.mxu0 0
  %503 = vmatprep.mubr.bf16.mxu0 0
  %504 = vmatmul.mubr.bf16.gmra.mrb[0].mxu0 %v94
  %v505 = vpop.f32.mrb[0].mxu0
  %v506 = vadd.f32 0.0, %v505
  %v507 = vpop.f32.mrb[0].mxu0
  %v508 = vpop.f32.mrb[0].mxu0
  %v509 = vadd.f32 0.0, %v508
  %v510 = vpop.f32.mrb[0].mxu0
  %511 = vmatprep.mubr.bf16.mxu0 0
  %512 = vmatmul.mubr.bf16.gmra.mrb[0].mxu0 %v95
  %v513 = vpop.f32.mrb[0].mxu0
  %v514 = vadd.f32 0.0, %v513
  %v515 = vpop.f32.mrb[0].mxu0
  %v516 = vpop.f32.mrb[0].mxu0
  %v517 = vadd.f32 0.0, %v516
  %v518 = vpop.f32.mrb[0].mxu0
  %519 = vmatprep.mubr.bf16.mxu0 0
  %520 = vmatmul.mubr.bf16.gmra.mrb[0].mxu0 %v96
  %v521 = vpop.f32.mrb[0].mxu0
  %v522 = vadd.f32 0.0, %v521
  %v523 = vpop.f32.mrb[0].mxu0
  %v524 = vpop.f32.mrb[0].mxu0
  %v525 = vadd.f32 0.0, %v524
  %v526 = vpop.f32.mrb[0].mxu0
  %527 = vmatprep.mubr.bf16.mxu0 0
  %528 = vmatmul.mubr.bf16.gmra.mrb[0].mxu0 %v97
  %v529 = vpop.f32.mrb[0].mxu0
  %v530 = vadd.f32 0.0, %v529
  %v531 = vpop.f32.mrb[0].mxu0
  %v532 = vpop.f32.mrb[0].mxu0
  %v533 = vadd.f32 0.0, %v532
  %v534 = vpop.f32.mrb[0].mxu0
  %535 = vmatprep.mubr.bf16.mxu0 0
  %536 = vmatmul.mubr.bf16.gmra.mrb[0].mxu0 %v98
  %v537 = vpop.f32.mrb[0].mxu0
  %v538 = vadd.f32 0.0, %v537
  %v539 = vpop.f32.mrb[0].mxu0
  %v540 = vpop.f32.mrb[0].mxu0
  %v541 = vadd.f32 0.0, %v540
  %v542 = vpop.f32.mrb[0].mxu0
  %543 = vmatprep.mubr.bf16.mxu0 0
  %544 = vmatmul.mubr.bf16.gmra.mrb[0].mxu0 %v99
  %v545 = vpop.f32.mrb[0].mxu0
  %v546 = vadd.f32 0.0, %v545
  %v547 = vpop.f32.mrb[0].mxu0
  %v548 = vpop.f32.mrb[0].mxu0
  %v549 = vadd.f32 0.0, %v548
  %v550 = vpop.f32.mrb[0].mxu0
  %551 = vmatprep.mubr.bf16.mxu0 0
  %552 = vmatmul.mubr.bf16.gmra.mrb[0].mxu0 %v100
  %v553 = vpop.f32.mrb[0].mxu0
  %v554 = vadd.f32 0.0, %v553
  %v555 = vpop.f32.mrb[0].mxu0
  %v556 = vpop.f32.mrb[0].mxu0
  %v557 = vadd.f32 0.0, %v556
  %v558 = vpop.f32.mrb[0].mxu0
  %559 = vmatprep.mubr.bf16.mxu0 0
  %560 = vmatmul.mubr.bf16.gmra.mrb[0].mxu0 %v101
  %v561 = vpop.f32.mrb[0].mxu0
  %v562 = vadd.f32 0.0, %v561
  %v563 = vpop.f32.mrb[0].mxu0
  %v564 = vpop.f32.mrb[0].mxu0
  %v565 = vadd.f32 0.0, %v564
  %v566 = vpop.f32.mrb[0].mxu0
  %567 = vdwg.mxu0
  %v568 = vpack.c.bf16 %v509, %v506
  %v569 = vpack.c.bf16 %v517, %v514
  %v570 = vpack.c.bf16 %v525, %v522
  %v571 = vpack.c.bf16 %v533, %v530
  %v572 = vpack.c.bf16 %v541, %v538
  %v573 = vpack.c.bf16 %v549, %v546
  %v574 = vpack.c.bf16 %v557, %v554
  %v575 = vpack.c.bf16 %v565, %v562
  %v576 = vld [vmem:[%s4] sm:$0xf]
  %v577 = vld [vmem:[%s4 + $0x4] sm:$0xf]
  %v578 = vld [vmem:[%s4 + $0x8] sm:$0xf]
  %v579 = vld [vmem:[%s4 + $0xc] sm:$0xf]
  %v580 = vld [vmem:[%s4 + $0x10] sm:$0xf]
  %v581 = vld [vmem:[%s4 + $0x14] sm:$0xf]
  %v582 = vld [vmem:[%s4 + $0x18] sm:$0xf]
  %v583 = vld [vmem:[%s4 + $0x1c] sm:$0xf]
  %v584 = vld [vmem:[%s4 + $0x20] sm:$0xf]
  %v585 = vld [vmem:[%s4 + $0x24] sm:$0xf]
  %v586 = vld [vmem:[%s4 + $0x28] sm:$0xf]
  %v587 = vld [vmem:[%s4 + $0x2c] sm:$0xf]
  %v588 = vld [vmem:[%s4 + $0x30] sm:$0xf]
  %v589 = vld [vmem:[%s4 + $0x34] sm:$0xf]
  %v590 = vld [vmem:[%s4 + $0x38] sm:$0xf]
  %v591 = vld [vmem:[%s4 + $0x3c] sm:$0xf]
  %v592 = vld [vmem:[%s5] sm:$0x1]
  %v594 = vlaneseq
  %v595 = vshrl.u32 %v594, 7
  %v596 = vsub.s32 0, %v595
  %v597 = vrot.slane %v592, %v596
  %v615 = vunpack.c.l.b16 %v576
  %v616 = vunpack.c.l.b16 %v577
  %v617 = vunpack.c.l.b16 %v578
  %v618 = vunpack.c.l.b16 %v579
  %v619 = vunpack.c.l.b16 %v580
  %v620 = vunpack.c.l.b16 %v581
  %v621 = vunpack.c.l.b16 %v582
  %v622 = vunpack.c.l.b16 %v583
  %v623 = vunpack.c.l.b16 %v584
  %v624 = vunpack.c.l.b16 %v585
  %v625 = vunpack.c.l.b16 %v586
  %v626 = vunpack.c.l.b16 %v587
  %v627 = vunpack.c.l.b16 %v588
  %v628 = vunpack.c.l.b16 %v589
  %v629 = vunpack.c.l.b16 %v590
  %v630 = vunpack.c.l.b16 %v591
  %v631 = vpack.c.b16 %v616, %v615
  %v632 = vpack.c.b16 %v618, %v617
  %v633 = vpack.c.b16 %v620, %v619
  %v634 = vpack.c.b16 %v622, %v621
  %v635 = vpack.c.b16 %v624, %v623
  %v636 = vpack.c.b16 %v626, %v625
  %v637 = vpack.c.b16 %v628, %v627
  %v638 = vpack.c.b16 %v630, %v629
  %647 = vmatprep.subr.bf16.mxu0 0
  %648 = vmatpush1.bf16.msra.mxu0 %v631
  %649 = vmatprep.subr.bf16.mxu0 0
  %650 = vmatpush1.bf16.msra.mxu0 %v632
  %651 = vmatprep.subr.bf16.mxu0 0
  %652 = vmatpush1.bf16.msra.mxu0 %v633
  %653 = vmatprep.subr.bf16.mxu0 0
  %654 = vmatpush1.bf16.msra.mxu0 %v634
  %655 = vmatprep.subr.bf16.mxu0 0
  %656 = vmatpush1.bf16.msra.mxu0 %v635
  %657 = vmatprep.subr.bf16.mxu0 0
  %658 = vmatpush1.bf16.msra.mxu0 %v636
  %659 = vmatprep.subr.bf16.mxu0 0
  %660 = vmatpush1.bf16.msra.mxu0 %v637
  %661 = vmatprep.subr.bf16.mxu0 0
  %662 = vmatpush1.bf16.msra.mxu0 %v638
  %663 = vmatprep.subr.bf16.mxu0 0
  %664 = vmatpush1.bf16.msra.mxu0 0
  %665 = vmatprep.subr.bf16.mxu0 0
  %666 = vmatpush1.bf16.msra.mxu0 0
  %667 = vmatprep.subr.bf16.mxu0 0
  %668 = vmatpush1.bf16.msra.mxu0 0
  %669 = vmatprep.subr.bf16.mxu0 0
  %670 = vmatpush1.bf16.msra.mxu0 0
  %671 = vmatprep.subr.bf16.mxu0 0
  %672 = vmatpush1.bf16.msra.mxu0 0
  %673 = vmatprep.subr.bf16.mxu0 0
  %674 = vmatpush1.bf16.msra.mxu0 0
  %675 = vmatprep.subr.bf16.mxu0 0
  %676 = vmatpush1.bf16.msra.mxu0 0
  %677 = vmatprep.subr.bf16.mxu0 0
  %678 = vmatpush1.bf16.msra.mxu0 0
  %679 = vmatprep.mubr.bf16.mxu0 0
  %680 = vmatmul.mubr.bf16.gmra.mrb[0].mxu0 %v568
  %v681 = vpop.f32.mrb[0].mxu0
  %v682 = vadd.f32 %v597, %v681
  %v683 = vpop.f32.mrb[0].mxu0
  %v684 = vpop.f32.mrb[0].mxu0
  %v685 = vadd.f32 %v597, %v684
  %v686 = vpop.f32.mrb[0].mxu0
  %687 = vmatprep.mubr.bf16.mxu0 0
  %688 = vmatmul.mubr.bf16.gmra.mrb[0].mxu0 %v569
  %v689 = vpop.f32.mrb[0].mxu0
  %v690 = vadd.f32 %v597, %v689
  %v691 = vpop.f32.mrb[0].mxu0
  %v692 = vpop.f32.mrb[0].mxu0
  %v693 = vadd.f32 %v597, %v692
  %v694 = vpop.f32.mrb[0].mxu0
  %695 = vmatprep.mubr.bf16.mxu0 0
  %696 = vmatmul.mubr.bf16.gmra.mrb[0].mxu0 %v570
  %v697 = vpop.f32.mrb[0].mxu0
  %v698 = vadd.f32 %v597, %v697
  %v699 = vpop.f32.mrb[0].mxu0
  %v700 = vpop.f32.mrb[0].mxu0
  %v701 = vadd.f32 %v597, %v700
  %v702 = vpop.f32.mrb[0].mxu0
  %703 = vmatprep.mubr.bf16.mxu0 0
  %704 = vmatmul.mubr.bf16.gmra.mrb[0].mxu0 %v571
  %v705 = vpop.f32.mrb[0].mxu0
  %v706 = vadd.f32 %v597, %v705
  %v707 = vpop.f32.mrb[0].mxu0
  %v708 = vpop.f32.mrb[0].mxu0
  %v709 = vadd.f32 %v597, %v708
  %v710 = vpop.f32.mrb[0].mxu0
  %711 = vmatprep.mubr.bf16.mxu0 0
  %712 = vmatmul.mubr.bf16.gmra.mrb[0].mxu0 %v572
  %v713 = vpop.f32.mrb[0].mxu0
  %v714 = vadd.f32 %v597, %v713
  %v715 = vpop.f32.mrb[0].mxu0
  %v716 = vpop.f32.mrb[0].mxu0
  %v717 = vadd.f32 %v597, %v716
  %v718 = vpop.f32.mrb[0].mxu0
  %719 = vmatprep.mubr.bf16.mxu0 0
  %720 = vmatmul.mubr.bf16.gmra.mrb[0].mxu0 %v573
  %v721 = vpop.f32.mrb[0].mxu0
  %v722 = vadd.f32 %v597, %v721
  %v723 = vpop.f32.mrb[0].mxu0
  %v724 = vpop.f32.mrb[0].mxu0
  %v725 = vadd.f32 %v597, %v724
  %v726 = vpop.f32.mrb[0].mxu0
  %727 = vmatprep.mubr.bf16.mxu0 0
  %728 = vmatmul.mubr.bf16.gmra.mrb[0].mxu0 %v574
  %v729 = vpop.f32.mrb[0].mxu0
  %v730 = vadd.f32 %v597, %v729
  %v731 = vpop.f32.mrb[0].mxu0
  %v732 = vpop.f32.mrb[0].mxu0
  %v733 = vadd.f32 %v597, %v732
  %v734 = vpop.f32.mrb[0].mxu0
  %735 = vmatprep.mubr.bf16.mxu0 0
  %736 = vmatmul.mubr.bf16.gmra.mrb[0].mxu0 %v575
  %v737 = vpop.f32.mrb[0].mxu0
  %v738 = vadd.f32 %v597, %v737
  %v739 = vpop.f32.mrb[0].mxu0
  %v740 = vpop.f32.mrb[0].mxu0
  %v741 = vadd.f32 %v597, %v740
  %v742 = vpop.f32.mrb[0].mxu0
  %743 = vdwg.mxu0
  %v744 = vmax.f32 %v682, 0.0
  %v745 = vmax.f32 %v685, 0.0
  %v746 = vmax.f32 %v690, 0.0
  %v747 = vmax.f32 %v693, 0.0
  %v748 = vmax.f32 %v698, 0.0
  %v749 = vmax.f32 %v701, 0.0
  %v750 = vmax.f32 %v706, 0.0
  %v751 = vmax.f32 %v709, 0.0
  %v752 = vmax.f32 %v714, 0.0
  %v753 = vmax.f32 %v717, 0.0
  %v754 = vmax.f32 %v722, 0.0
  %v755 = vmax.f32 %v725, 0.0
  %v756 = vmax.f32 %v730, 0.0
  %v757 = vmax.f32 %v733, 0.0
  %v758 = vmax.f32 %v738, 0.0
  %v759 = vmax.f32 %v741, 0.0
  %v760 = vpack.c.bf16 %v745, %v744
  %v761 = vpack.c.bf16 %v747, %v746
  %v762 = vpack.c.bf16 %v749, %v748
  %v763 = vpack.c.bf16 %v751, %v750
  %v764 = vpack.c.bf16 %v753, %v752
  %v765 = vpack.c.bf16 %v755, %v754
  %v766 = vpack.c.bf16 %v757, %v756
  %v767 = vpack.c.bf16 %v759, %v758
  %768 = vst [vmem:[#allocation2] sm:$0xff] %v760
  %769 = vst [vmem:[#allocation2 + $0x8] sm:$0xff] %v761
  %770 = vst [vmem:[#allocation2 + $0x10] sm:$0xff] %v762
  %771 = vst [vmem:[#allocation2 + $0x18] sm:$0xff] %v763
  %772 = vst [vmem:[#allocation2 + $0x20] sm:$0xff] %v764
  %773 = vst [vmem:[#allocation2 + $0x28] sm:$0xff] %v765
  %774 = vst [vmem:[#allocation2 + $0x30] sm:$0xff] %v766
  %775 = vst [vmem:[#allocation2 + $0x38] sm:$0xff] %v767
  %v776 = vld [vmem:[#allocation2] sm:$0xff]
  %v777 = vld [vmem:[#allocation2 + $0x8] sm:$0xff]
  %v778 = vld [vmem:[#allocation2 + $0x10] sm:$0xff]
  %v779 = vld [vmem:[#allocation2 + $0x18] sm:$0xff]
  %v780 = vld [vmem:[#allocation2 + $0x20] sm:$0xff]
  %v781 = vld [vmem:[#allocation2 + $0x28] sm:$0xff]
  %v782 = vld [vmem:[#allocation2 + $0x30] sm:$0xff]
  %v783 = vld [vmem:[#allocation2 + $0x38] sm:$0xff]
  %784 = vmatprep.subr.bf16.mxu0 0
  %785 = vmatpush1.bf16.msra.mxu0 %v776
  %786 = vmatprep.subr.bf16.mxu0 0
  %787 = vmatpush1.bf16.msra.mxu0 %v777
  %788 = vmatprep.subr.bf16.mxu0 0
  %789 = vmatpush1.bf16.msra.mxu0 %v778
  %790 = vmatprep.subr.bf16.mxu0 0
  %791 = vmatpush1.bf16.msra.mxu0 %v779
  %792 = vmatprep.subr.bf16.mxu0 0
  %793 = vmatpush1.bf16.msra.mxu0 %v780
  %794 = vmatprep.subr.bf16.mxu0 0
  %795 = vmatpush1.bf16.msra.mxu0 %v781
  %796 = vmatprep.subr.bf16.mxu0 0
  %797 = vmatpush1.bf16.msra.mxu0 %v782
  %798 = vmatprep.subr.bf16.mxu0 0
  %799 = vmatpush1.bf16.msra.mxu0 %v783
  %800 = vmatprep.subr.bf16.mxu0 0
  %801 = vmatpush1.bf16.msra.mxu0 0
  %802 = vmatprep.subr.bf16.mxu0 0
  %803 = vmatpush1.bf16.msra.mxu0 0
  %804 = vmatprep.subr.bf16.mxu0 0
  %805 = vmatpush1.bf16.msra.mxu0 0
  %806 = vmatprep.subr.bf16.mxu0 0
  %807 = vmatpush1.bf16.msra.mxu0 0
  %808 = vmatprep.subr.bf16.mxu0 0
  %809 = vmatpush1.bf16.msra.mxu0 0
  %810 = vmatprep.subr.bf16.mxu0 0
  %811 = vmatpush1.bf16.msra.mxu0 0
  %812 = vmatprep.subr.bf16.mxu0 0
  %813 = vmatpush1.bf16.msra.mxu0 0
  %814 = vmatprep.subr.bf16.mxu0 0
  %815 = vmatpush1.bf16.msra.mxu0 0
  %816 = vmatprep.mubr.bf16.mxu0 0
  %817 = vmatmul.mubr.bf16.gmra.mrb[0].mxu0 %v94
  %v818 = vpop.f32.mrb[0].mxu0
  %v819 = vadd.f32 0.0, %v818
  %v820 = vpop.f32.mrb[0].mxu0
  %v821 = vpop.f32.mrb[0].mxu0
  %v822 = vadd.f32 0.0, %v821
  %v823 = vpop.f32.mrb[0].mxu0
  %824 = vmatprep.mubr.bf16.mxu0 0
  %825 = vmatmul.mubr.bf16.gmra.mrb[0].mxu0 %v95
  %v826 = vpop.f32.mrb[0].mxu0
  %v827 = vadd.f32 0.0, %v826
  %v828 = vpop.f32.mrb[0].mxu0
  %v829 = vpop.f32.mrb[0].mxu0
  %v830 = vadd.f32 0.0, %v829
  %v831 = vpop.f32.mrb[0].mxu0
  %832 = vmatprep.mubr.bf16.mxu0 0
  %833 = vmatmul.mubr.bf16.gmra.mrb[0].mxu0 %v96
  %v834 = vpop.f32.mrb[0].mxu0
  %v835 = vadd.f32 0.0, %v834
  %v836 = vpop.f32.mrb[0].mxu0
  %v837 = vpop.f32.mrb[0].mxu0
  %v838 = vadd.f32 0.0, %v837
  %v839 = vpop.f32.mrb[0].mxu0
  %840 = vmatprep.mubr.bf16.mxu0 0
  %841 = vmatmul.mubr.bf16.gmra.mrb[0].mxu0 %v97
  %v842 = vpop.f32.mrb[0].mxu0
  %v843 = vadd.f32 0.0, %v842
  %v844 = vpop.f32.mrb[0].mxu0
  %v845 = vpop.f32.mrb[0].mxu0
  %v846 = vadd.f32 0.0, %v845
  %v847 = vpop.f32.mrb[0].mxu0
  %848 = vmatprep.mubr.bf16.mxu0 0
  %849 = vmatmul.mubr.bf16.gmra.mrb[0].mxu0 %v98
  %v850 = vpop.f32.mrb[0].mxu0
  %v851 = vadd.f32 0.0, %v850
  %v852 = vpop.f32.mrb[0].mxu0
  %v853 = vpop.f32.mrb[0].mxu0
  %v854 = vadd.f32 0.0, %v853
  %v855 = vpop.f32.mrb[0].mxu0
  %856 = vmatprep.mubr.bf16.mxu0 0
  %857 = vmatmul.mubr.bf16.gmra.mrb[0].mxu0 %v99
  %v858 = vpop.f32.mrb[0].mxu0
  %v859 = vadd.f32 0.0, %v858
  %v860 = vpop.f32.mrb[0].mxu0
  %v861 = vpop.f32.mrb[0].mxu0
  %v862 = vadd.f32 0.0, %v861
  %v863 = vpop.f32.mrb[0].mxu0
  %864 = vmatprep.mubr.bf16.mxu0 0
  %865 = vmatmul.mubr.bf16.gmra.mrb[0].mxu0 %v100
  %v866 = vpop.f32.mrb[0].mxu0
  %v867 = vadd.f32 0.0, %v866
  %v868 = vpop.f32.mrb[0].mxu0
  %v869 = vpop.f32.mrb[0].mxu0
  %v870 = vadd.f32 0.0, %v869
  %v871 = vpop.f32.mrb[0].mxu0
  %872 = vmatprep.mubr.bf16.mxu0 0
  %873 = vmatmul.mubr.bf16.gmra.mrb[0].mxu0 %v101
  %v874 = vpop.f32.mrb[0].mxu0
  %v875 = vadd.f32 0.0, %v874
  %v876 = vpop.f32.mrb[0].mxu0
  %v877 = vpop.f32.mrb[0].mxu0
  %v878 = vadd.f32 0.0, %v877
  %v879 = vpop.f32.mrb[0].mxu0
  %880 = vdwg.mxu0
  %v881 = vpack.c.bf16 %v822, %v819
  %v882 = vpack.c.bf16 %v830, %v827
  %v883 = vpack.c.bf16 %v838, %v835
  %v884 = vpack.c.bf16 %v846, %v843
  %v885 = vpack.c.bf16 %v854, %v851
  %v886 = vpack.c.bf16 %v862, %v859
  %v887 = vpack.c.bf16 %v870, %v867
  %v888 = vpack.c.bf16 %v878, %v875
  %v889 = vld [vmem:[%s6] sm:$0xf]
  %v890 = vld [vmem:[%s6 + $0x4] sm:$0xf]
  %v891 = vld [vmem:[%s6 + $0x8] sm:$0xf]
  %v892 = vld [vmem:[%s6 + $0xc] sm:$0xf]
  %v893 = vld [vmem:[%s6 + $0x10] sm:$0xf]
  %v894 = vld [vmem:[%s6 + $0x14] sm:$0xf]
  %v895 = vld [vmem:[%s6 + $0x18] sm:$0xf]
  %v896 = vld [vmem:[%s6 + $0x1c] sm:$0xf]
  %v897 = vld [vmem:[%s6 + $0x20] sm:$0xf]
  %v898 = vld [vmem:[%s6 + $0x24] sm:$0xf]
  %v899 = vld [vmem:[%s6 + $0x28] sm:$0xf]
  %v900 = vld [vmem:[%s6 + $0x2c] sm:$0xf]
  %v901 = vld [vmem:[%s6 + $0x30] sm:$0xf]
  %v902 = vld [vmem:[%s6 + $0x34] sm:$0xf]
  %v903 = vld [vmem:[%s6 + $0x38] sm:$0xf]
  %v904 = vld [vmem:[%s6 + $0x3c] sm:$0xf]
  %v905 = vld [vmem:[%s7] sm:$0x1]
  %v907 = vlaneseq
  %v908 = vshrl.u32 %v907, 7
  %v909 = vsub.s32 0, %v908
  %v910 = vrot.slane %v905, %v909
  %v928 = vunpack.c.l.b16 %v889
  %v929 = vunpack.c.l.b16 %v890
  %v930 = vunpack.c.l.b16 %v891
  %v931 = vunpack.c.l.b16 %v892
  %v932 = vunpack.c.l.b16 %v893
  %v933 = vunpack.c.l.b16 %v894
  %v934 = vunpack.c.l.b16 %v895
  %v935 = vunpack.c.l.b16 %v896
  %v936 = vunpack.c.l.b16 %v897
  %v937 = vunpack.c.l.b16 %v898
  %v938 = vunpack.c.l.b16 %v899
  %v939 = vunpack.c.l.b16 %v900
  %v940 = vunpack.c.l.b16 %v901
  %v941 = vunpack.c.l.b16 %v902
  %v942 = vunpack.c.l.b16 %v903
  %v943 = vunpack.c.l.b16 %v904
  %v944 = vpack.c.b16 %v929, %v928
  %v945 = vpack.c.b16 %v931, %v930
  %v946 = vpack.c.b16 %v933, %v932
  %v947 = vpack.c.b16 %v935, %v934
  %v948 = vpack.c.b16 %v937, %v936
  %v949 = vpack.c.b16 %v939, %v938
  %v950 = vpack.c.b16 %v941, %v940
  %v951 = vpack.c.b16 %v943, %v942
  %960 = vmatprep.subr.bf16.mxu0 0
  %961 = vmatpush1.bf16.msra.mxu0 %v944
  %962 = vmatprep.subr.bf16.mxu0 0
  %963 = vmatpush1.bf16.msra.mxu0 %v945
  %964 = vmatprep.subr.bf16.mxu0 0
  %965 = vmatpush1.bf16.msra.mxu0 %v946
  %966 = vmatprep.subr.bf16.mxu0 0
  %967 = vmatpush1.bf16.msra.mxu0 %v947
  %968 = vmatprep.subr.bf16.mxu0 0
  %969 = vmatpush1.bf16.msra.mxu0 %v948
  %970 = vmatprep.subr.bf16.mxu0 0
  %971 = vmatpush1.bf16.msra.mxu0 %v949
  %972 = vmatprep.subr.bf16.mxu0 0
  %973 = vmatpush1.bf16.msra.mxu0 %v950
  %974 = vmatprep.subr.bf16.mxu0 0
  %975 = vmatpush1.bf16.msra.mxu0 %v951
  %976 = vmatprep.subr.bf16.mxu0 0
  %977 = vmatpush1.bf16.msra.mxu0 0
  %978 = vmatprep.subr.bf16.mxu0 0
  %979 = vmatpush1.bf16.msra.mxu0 0
  %980 = vmatprep.subr.bf16.mxu0 0
  %981 = vmatpush1.bf16.msra.mxu0 0
  %982 = vmatprep.subr.bf16.mxu0 0
  %983 = vmatpush1.bf16.msra.mxu0 0
  %984 = vmatprep.subr.bf16.mxu0 0
  %985 = vmatpush1.bf16.msra.mxu0 0
  %986 = vmatprep.subr.bf16.mxu0 0
  %987 = vmatpush1.bf16.msra.mxu0 0
  %988 = vmatprep.subr.bf16.mxu0 0
  %989 = vmatpush1.bf16.msra.mxu0 0
  %990 = vmatprep.subr.bf16.mxu0 0
  %991 = vmatpush1.bf16.msra.mxu0 0
  %992 = vmatprep.mubr.bf16.mxu0 0
  %993 = vmatmul.mubr.bf16.gmra.mrb[0].mxu0 %v881
  %v994 = vpop.f32.mrb[0].mxu0
  %v995 = vadd.f32 %v910, %v994
  %v996 = vpop.f32.mrb[0].mxu0
  %v997 = vpop.f32.mrb[0].mxu0
  %v998 = vadd.f32 %v910, %v997
  %v999 = vpop.f32.mrb[0].mxu0
  %1000 = vmatprep.mubr.bf16.mxu0 0
  %1001 = vmatmul.mubr.bf16.gmra.mrb[0].mxu0 %v882
  %v1002 = vpop.f32.mrb[0].mxu0
  %v1003 = vadd.f32 %v910, %v1002
  %v1004 = vpop.f32.mrb[0].mxu0
  %v1005 = vpop.f32.mrb[0].mxu0
  %v1006 = vadd.f32 %v910, %v1005
  %v1007 = vpop.f32.mrb[0].mxu0
  %1008 = vmatprep.mubr.bf16.mxu0 0
  %1009 = vmatmul.mubr.bf16.gmra.mrb[0].mxu0 %v883
  %v1010 = vpop.f32.mrb[0].mxu0
  %v1011 = vadd.f32 %v910, %v1010
  %v1012 = vpop.f32.mrb[0].mxu0
  %v1013 = vpop.f32.mrb[0].mxu0
  %v1014 = vadd.f32 %v910, %v1013
  %v1015 = vpop.f32.mrb[0].mxu0
  %1016 = vmatprep.mubr.bf16.mxu0 0
  %1017 = vmatmul.mubr.bf16.gmra.mrb[0].mxu0 %v884
  %v1018 = vpop.f32.mrb[0].mxu0
  %v1019 = vadd.f32 %v910, %v1018
  %v1020 = vpop.f32.mrb[0].mxu0
  %v1021 = vpop.f32.mrb[0].mxu0
  %v1022 = vadd.f32 %v910, %v1021
  %v1023 = vpop.f32.mrb[0].mxu0
  %1024 = vmatprep.mubr.bf16.mxu0 0
  %1025 = vmatmul.mubr.bf16.gmra.mrb[0].mxu0 %v885
  %v1026 = vpop.f32.mrb[0].mxu0
  %v1027 = vadd.f32 %v910, %v1026
  %v1028 = vpop.f32.mrb[0].mxu0
  %v1029 = vpop.f32.mrb[0].mxu0
  %v1030 = vadd.f32 %v910, %v1029
  %v1031 = vpop.f32.mrb[0].mxu0
  %1032 = vmatprep.mubr.bf16.mxu0 0
  %1033 = vmatmul.mubr.bf16.gmra.mrb[0].mxu0 %v886
  %v1034 = vpop.f32.mrb[0].mxu0
  %v1035 = vadd.f32 %v910, %v1034
  %v1036 = vpop.f32.mrb[0].mxu0
  %v1037 = vpop.f32.mrb[0].mxu0
  %v1038 = vadd.f32 %v910, %v1037
  %v1039 = vpop.f32.mrb[0].mxu0
  %1040 = vmatprep.mubr.bf16.mxu0 0
  %1041 = vmatmul.mubr.bf16.gmra.mrb[0].mxu0 %v887
  %v1042 = vpop.f32.mrb[0].mxu0
  %v1043 = vadd.f32 %v910, %v1042
  %v1044 = vpop.f32.mrb[0].mxu0
  %v1045 = vpop.f32.mrb[0].mxu0
  %v1046 = vadd.f32 %v910, %v1045
  %v1047 = vpop.f32.mrb[0].mxu0
  %1048 = vmatprep.mubr.bf16.mxu0 0
  %1049 = vmatmul.mubr.bf16.gmra.mrb[0].mxu0 %v888
  %v1050 = vpop.f32.mrb[0].mxu0
  %v1051 = vadd.f32 %v910, %v1050
  %v1052 = vpop.f32.mrb[0].mxu0
  %v1053 = vpop.f32.mrb[0].mxu0
  %v1054 = vadd.f32 %v910, %v1053
  %v1055 = vpop.f32.mrb[0].mxu0
  %1056 = vdwg.mxu0
  %1057 = vst [vmem:[%s8] sm:$0xff] %v995
  %1058 = vst [vmem:[%s8 + $0x8] sm:$0xff] %v998
  %1059 = vst [vmem:[%s8 + $0x10] sm:$0xff] %v1003
  %1060 = vst [vmem:[%s8 + $0x18] sm:$0xff] %v1006
  %1061 = vst [vmem:[%s8 + $0x20] sm:$0xff] %v1011
  %1062 = vst [vmem:[%s8 + $0x28] sm:$0xff] %v1014
  %1063 = vst [vmem:[%s8 + $0x30] sm:$0xff] %v1019
  %1064 = vst [vmem:[%s8 + $0x38] sm:$0xff] %v1022
  %1065 = vst [vmem:[%s8 + $0x40] sm:$0xff] %v1027
  %1066 = vst [vmem:[%s8 + $0x48] sm:$0xff] %v1030
  %1067 = vst [vmem:[%s8 + $0x50] sm:$0xff] %v1035
  %1068 = vst [vmem:[%s8 + $0x58] sm:$0xff] %v1038
  %1069 = vst [vmem:[%s8 + $0x60] sm:$0xff] %v1043
  %1070 = vst [vmem:[%s8 + $0x68] sm:$0xff] %v1046
  %1071 = vst [vmem:[%s8 + $0x70] sm:$0xff] %v1051
  %1072 = vst [vmem:[%s8 + $0x78] sm:$0xff] %v1054
  // Predicated region
  $region34: #{net_forward.1} parent=0 // pred_check
    _
  $region35: #{net_forward.1} parent=0 // pred_check_branch
    %1074 = sbr.rel (0) target = $region37
  $region36: #{net_forward.1} parent=0 // pred_region
    _
  $region37: #{net_forward.1} parent=0 // pred_fallthru
    _
  // Predicated region
  $region38: #{net_forward.1} parent=0 // pred_check
    _
  $region39: #{net_forward.1} parent=0 // pred_check_branch
    %1076 = sbr.rel (0) target = $region41
  $region40: #{net_forward.1} parent=0 // pred_region
    _
  $region41: #{net_forward.1} parent=0 // pred_fallthru
    _

</llo_original>
